<compile_context>
chip_gen: v5e
topology: v5e:2x2
jax: 0.10.0
libtpu: 0.0.40
codegen_flags: <defaults>
</compile_context>

<pallas_src>
import functools

import jax
import jax.numpy as jnp
from jax.experimental import pallas as pl
from jax.experimental.pallas import tpu as pltpu


def _round_up(x, m):
    return ((x + m - 1) // m) * m


def _odefunc_kernel(z_ref, w_ref, b_ref, o_ref, *, beta, mxu_dtype):
    # z_ref: (TB, H)  f32   (batch tile)
    # w_ref: (H, O)   f32/bf16  (pre-transposed weight, resident across the grid)
    # b_ref: (1, O)   f32   (resident)
    # o_ref: (TB, O)  f32   (unpadded O -> minimal HBM writeback)
    x = z_ref[...]
    if mxu_dtype is not None:          # optional in-kernel cast for bf16 MXU operands
        x = x.astype(mxu_dtype)

    # Linear: z @ W_t + b  -- MXU matmul, f32 accumulation, no in-kernel transpose.
    y = jnp.dot(x, w_ref[...], preferred_element_type=jnp.float32)
    y = y + b_ref[...]

    # Clamped softplus (module semantics): temp = beta*y ; temp[temp>20] = 20 ;
    # out = (1/beta) * log(1 + exp(temp)).  Epilogue stays in f32 (v5e: no bf16 VPU/EUP).
    temp = y if beta == 1.0 else beta * y
    temp = jnp.minimum(temp, jnp.float32(20.0))   # matches the torch masked clamp
    out = jnp.log1p(jnp.exp(temp))
    if beta != 1.0:
        out = (1.0 / beta) * out

    o_ref[...] = out.astype(o_ref.dtype)


def make_odefunc_forward(weight, bias, beta, *, block_b=1024, use_bf16=False):
    """Build ODEFunc.forward(t, z) as a reusable closure.

    Weight/bias preprocessing (transpose to (H, O), optional bf16 cast, bias reshape)
    is done exactly once here, so repeated solver-step calls do no per-call transposes,
    casts or reshapes in the wrapper.

    use_bf16=True is an explicit accuracy trade-off (bf16 MXU operands, f32 accumulate);
    the default keeps full f32 numerics matching the torch module.
    """
    O, H = weight.shape
    operand_dtype = jnp.bfloat16 if use_bf16 else jnp.float32

    w_t = jnp.asarray(weight).T.astype(operand_dtype)            # (H, O), transposed once
    b_p = jnp.asarray(bias).reshape(1, O).astype(jnp.float32)    # (1, O)

    kernel = functools.partial(
        _odefunc_kernel,
        beta=float(beta),
        mxu_dtype=(jnp.bfloat16 if use_bf16 else None))
    w_itemsize = 2 if use_bf16 else 4

    @jax.jit
    def forward(t, z):
        del t  # unused by the module
        z = z.astype(jnp.float32)
        B = z.shape[0]

        # Tile selection: round B to a sublane multiple, then pick the tile COUNT
        # first (>=2 when possible so dimension_semantics=("parallel",) actually
        # splits across v7x's two TensorCores), then TB from the count.  Padding is
        # capped at <8 rows per tile (vs. padding B up to the next multiple of TB).
        B8 = _round_up(B, 8)
        n_tiles = max(pl.cdiv(B8, block_b), 2) if B8 > 8 else 1
        TB = _round_up(pl.cdiv(B8, n_tiles), 8)
        n_tiles = pl.cdiv(B8, TB)
        B_pad = n_tiles * TB

        z_p = z
        if B_pad != B:                    # only pad when B is not already aligned
            z_p = jnp.zeros((B_pad, H), jnp.float32).at[:B].set(z)

        cost = pl.CostEstimate(
            flops=2 * B_pad * H * O,
            transcendentals=2 * B_pad * O,                      # exp + log1p
            bytes_accessed=4 * B_pad * H + w_itemsize * H * O
            + 4 * O + 4 * B_pad * O,
        )

        out = pl.pallas_call(
            kernel,
            out_shape=jax.ShapeDtypeStruct((B_pad, O), jnp.float32),
            grid_spec=pltpu.PrefetchScalarGridSpec(
                num_scalar_prefetch=0,
                grid=(n_tiles,),                                 # tile only the batch axis
                in_specs=[
                    pl.BlockSpec((TB, H), lambda i: (i, 0)),     # z tile
                    pl.BlockSpec((H, O), lambda i: (0, 0)),      # weight resident (full)
                    pl.BlockSpec((1, O), lambda i: (0, 0)),      # bias resident (full)
                ],
                out_specs=pl.BlockSpec((TB, O), lambda i: (i, 0)),
            ),
            compiler_params=pltpu.CompilerParams(
                dimension_semantics=("parallel",),               # shard batch across TCs (v7x)
            ),
            cost_estimate=cost,
        )(z_p, w_t, b_p)

        if B_pad != B:
            out = out[:B]                 # no O slicing: output is already unpadded
        return out

    return forward


def _reference(z, weight, bias, beta):
    y = jnp.dot(z.astype(jnp.float32), weight.T.astype(jnp.float32),
                preferred_element_type=jnp.float32)
    y = y + bias.astype(jnp.float32)
    temp = beta * y
    temp = jnp.where(temp > 20.0, 20.0, temp)
    return (1.0 / beta) * jnp.log(1.0 + jnp.exp(temp))


if __name__ == "__main__":
    # Small shapes consistent with the module's forward: z is (batch, hidden).
    hidden_channels = 32
    output_channels = 16

    key = jax.random.PRNGKey(0)
    kz, kw, kb, kz2 = jax.random.split(key, 4)

    # Deterministic parameter init (PyTorch nn.Linear-style uniform bound).
    bound = 1.0 / (hidden_channels ** 0.5)
    weight = jax.random.uniform(
        kw, (output_channels, hidden_channels), jnp.float32, -bound, bound)
    bias = jax.random.uniform(kb, (output_channels,), jnp.float32, -bound, bound)

    # Case 1: beta = 1.0, aligned batch (no padding, no post-call slice).
    batch = 8
    beta = 1.0
    z = jax.random.normal(kz, (batch, hidden_channels), jnp.float32)
    forward = make_odefunc_forward(weight, bias, beta)   # f32 default
    out = jax.block_until_ready(forward(0.0, z))
    assert out.shape == (batch, output_channels)
    assert out.dtype == jnp.float32
    assert jnp.allclose(out, _reference(z, weight, bias, beta), atol=1e-5, rtol=1e-5)

    # Case 2: beta != 1.0, ragged batch (exercises padding, slice and the 2-tile grid).
    batch2 = 13
    beta2 = 2.0
    z2 = jax.random.normal(kz2, (batch2, hidden_channels), jnp.float32)
    forward2 = make_odefunc_forward(weight, bias, beta2)
    out2 = jax.block_until_ready(forward2(0.0, z2))
    assert out2.shape == (batch2, output_channels)
    assert jnp.allclose(out2, _reference(z2, weight, bias, beta2), atol=1e-5, rtol=1e-5)

    print("KERNEL_OK")
</pallas_src>

<mosaic_0001>
module attributes {stable_mosaic.version = 11 : i64} {
  func.func @_odefunc_kernel(%arg0: i32, %arg1: memref<8x32xf32, #tpu.memory_space<vmem>>, %arg2: memref<32x16xf32, #tpu.memory_space<vmem>>, %arg3: memref<1x16xf32, #tpu.memory_space<vmem>>, %arg4: memref<8x16xf32, #tpu.memory_space<vmem>>) attributes {dimension_semantics = [#tpu.dimension_semantics<parallel>], iteration_bounds = array<i64: 1>, scalar_prefetch = 0 : i64, scratch_operands = 0 : i64, tpu.core_type = #tpu.core_type<tc>, window_params = [{transform_indices = @transform_0, window_bounds = array<i64: 8, 32>}, {pipeline_mode = #tpu.pipeline_mode<synchronous>, transform_indices = @transform_1, window_bounds = array<i64: 32, 16>}, {pipeline_mode = #tpu.pipeline_mode<synchronous>, transform_indices = @transform_2, window_bounds = array<i64: 1, 16>}, {transform_indices = @transform_3, window_bounds = array<i64: 8, 16>}]} {
    %c0 = arith.constant 0 : index
    %c0_0 = arith.constant 0 : index
    %0 = vector.load %arg1[%c0, %c0_0] : memref<8x32xf32, #tpu.memory_space<vmem>>, vector<8x32xf32>
    %c0_1 = arith.constant 0 : index
    %c0_2 = arith.constant 0 : index
    %1 = vector.load %arg2[%c0_1, %c0_2] : memref<32x16xf32, #tpu.memory_space<vmem>>, vector<32x16xf32>
    %cst = arith.constant dense<0.000000e+00> : vector<8x16xf32>
    %2 = tpu.matmul %0, %1, %cst {dimension_numbers = #tpu.dot_dimension_numbers<[1], [0], [0], [1], [0, 0, 1, 1], [], []>} : vector<8x32xf32>, vector<32x16xf32>, vector<8x16xf32> -> vector<8x16xf32>
    %c0_3 = arith.constant 0 : index
    %c0_4 = arith.constant 0 : index
    %3 = vector.load %arg3[%c0_3, %c0_4] : memref<1x16xf32, #tpu.memory_space<vmem>>, vector<1x16xf32>
    %4 = vector.broadcast %3 : vector<1x16xf32> to vector<8x16xf32>
    %5 = arith.addf %2, %4 : vector<8x16xf32>
    %cst_5 = arith.constant 2.000000e+01 : f32
    %6 = vector.broadcast %cst_5 : f32 to vector<8x16xf32>
    %7 = arith.minimumf %5, %6 : vector<8x16xf32>
    %8 = math.exp %7 : vector<8x16xf32>
    %9 = math.log1p %8 : vector<8x16xf32>
    %c0_6 = arith.constant 0 : index
    %c0_7 = arith.constant 0 : index
    %10 = vector.load %arg4[%c0_6, %c0_7] : memref<8x16xf32, #tpu.memory_space<vmem>>, vector<8x16xf32>
    tpu.vector_store %arg4[%c0_6, %c0_7], %9 {strides = array<i32>} : memref<8x16xf32, #tpu.memory_space<vmem>>, vector<8x16xf32>,
    return
  }
  func.func @transform_0(%arg0: i32) -> (i32, i32) {
    %c0_i32 = arith.constant 0 : i32
    %c0_i32_0 = arith.constant 0 : i32
    return %arg0, %c0_i32 : i32, i32
  }
  func.func @transform_1(%arg0: i32) -> (i32, i32) {
    %c0_i32 = arith.constant 0 : i32
    %c0_i32_0 = arith.constant 0 : i32
    %c0_i32_1 = arith.constant 0 : i32
    return %c0_i32, %c0_i32_0 : i32, i32
  }
  func.func @transform_2(%arg0: i32) -> (i32, i32) {
    %c0_i32 = arith.constant 0 : i32
    %c0_i32_0 = arith.constant 0 : i32
    %c0_i32_1 = arith.constant 0 : i32
    return %c0_i32, %c0_i32_0 : i32, i32
  }
  func.func @transform_3(%arg0: i32) -> (i32, i32) {
    %c0_i32 = arith.constant 0 : i32
    %c0_i32_0 = arith.constant 0 : i32
    return %arg0, %c0_i32 : i32, i32
  }
}

</mosaic_0001>

<llo_original>
// kernel: forward.1
$region0: #{forward.1}
  #allocation0 [shape = 'u32[]', space=smem, size = 0x4, offset = 0x4, fixed_abs, tag = 'smem constant byte address 0x4 - core index']
  #allocation1 [shape = 'u32[72,128]{1,0:T(1,128)}', space=vmem, size = 0x9000, scoped, tag = 'internal scratch']
  %s0 = inlined_call_operand.hbm [shape: f32[8,32], index: 0, kind: input, shape index: {}]
  %s1 = inlined_call_operand.hbm [shape: f32[32,16], index: 1, kind: input, shape index: {}]
  %s2 = inlined_call_operand.vmem [shape: f32[1,16], index: 2, kind: input, shape index: {}]
  %s3 = inlined_call_operand.hbm [shape: f32[8,16], index: 3, kind: output, shape index: {}]
  %s4 = sld [smem:[#allocation0]]
  $region30: #{forward.1} parent=0
    _
  %s6 = ssub.s32 1, %s4
  %s7 = scalar_select 0, %s6, %s4
  $region1: #{forward.1} parent=0
    #allocation2 [shape = 'u8[4096]{0}', space=vmem, size = 0x1000, scoped, tag = 'input window, operand 0, single buffered']
    #allocation3 [shape = 's32[1]{0}', space=sflag, size = 0x4, scoped, tag = 'scoped memory for forward.1']
    #allocation4 [shape = 's32[1]{0}', space=sflag, size = 0x4, scoped, tag = 'scoped memory for forward.1']
    #allocation5 [shape = 'u8[16384]{0}', space=vmem, size = 0x4000, scoped, tag = 'input window, operand 1, single buffered']
    #allocation6 [shape = 's32[1]{0}', space=sflag, size = 0x4, scoped, tag = 'scoped memory for forward.1']
    #allocation7 [shape = 'u8[4096]{0}', space=vmem, size = 0x1000, scoped, tag = 'output window, operand 0, single buffered']
    %8 = vsyncpa [#allocation3], 0
    %9 = vsyncpa [#allocation6], 0
    %10 = vsyncpa [#allocation4], 0
    // Predicated region
    $region2: #{forward.1} parent=1 // pred_check
      _
    $region3: #{forward.1} parent=1 // pred_check_branch
      %12 = sbr.rel (0) target = $region5
    $region4: #{forward.1} parent=1 // pred_region
      %14 = vsyncadd [#allocation3], 0
      %s16 = sshll.u32 %s0, 4
      %s17 = int_to_ptr.hbm [resolvable:$true] %s16
      %s18 = sshll.u32 [#allocation2], 4
      %s19 = int_to_ptr.vmem [resolvable:$true] %s18
      %21 = dma.hbm_to_vmem [thread:$0]  %s17, 128, %s19, [#allocation3]
    $region5: #{forward.1} parent=1 // pred_fallthru
      _
    // Predicated region
    $region6: #{forward.1} parent=1 // pred_check
      _
    $region7: #{forward.1} parent=1 // pred_check_branch
      %23 = sbr.rel (0) target = $region9
    $region8: #{forward.1} parent=1 // pred_region
      %25 = vsyncadd [#allocation6], 0
      %s26 = sshll.u32 %s1, 4
      %s27 = int_to_ptr.hbm [resolvable:$true] %s26
      %s28 = sshll.u32 [#allocation5], 4
      %s29 = int_to_ptr.vmem [resolvable:$true] %s28
      %34 = dma.hbm_to_vmem [thread:$0]  %s27, 512, %s29, [#allocation6], 128, 128, 8
    $region9: #{forward.1} parent=1 // pred_fallthru
      _
    // Predicated region
    $region10: #{forward.1} parent=1 // pred_check
      _
    $region11: #{forward.1} parent=1 // pred_check_branch
      %36 = sbr.rel (0) target = $region13
    $region12: #{forward.1} parent=1 // pred_region
      _
    $region13: #{forward.1} parent=1 // pred_fallthru
      _
    // Predicated region
    $region14: #{forward.1} parent=1 // pred_check
      _
    $region15: #{forward.1} parent=1 // pred_check_branch
      %38 = sbr.rel (0) target = $region17
    $region16: #{forward.1} parent=1 // pred_region
      %40 = dma.done [#allocation3], 128
    $region17: #{forward.1} parent=1 // pred_fallthru
      _
    // Predicated region
    $region18: #{forward.1} parent=1 // pred_check
      _
    $region19: #{forward.1} parent=1 // pred_check_branch
      %42 = sbr.rel (0) target = $region21
    $region20: #{forward.1} parent=1 // pred_region
      %44 = dma.done [#allocation6], 512
    $region21: #{forward.1} parent=1 // pred_fallthru
      _
    %v45 = vld [vmem:[#allocation2] sm:$0xff]
    %v46 = vld [vmem:[#allocation5] sm:$0xff]
    %v47 = vld [vmem:[#allocation5 + $0x8] sm:$0xff]
    %v48 = vld [vmem:[#allocation5 + $0x10] sm:$0xff]
    %v49 = vld [vmem:[#allocation5 + $0x18] sm:$0xff]
    %v50 = vld [vmem:[%s2] sm:$0x1]
    %v52 = vperm.slane %v50, 0
    %vm54 = vcmask 261120
    %v56 = vsel %vm54, %v45, 0
    %58 = vmatpush.msra.mxu0 0.0
    %59 = vmatpush.msra.mxu0 0.0
    %60 = vmatpush.msra.mxu0 0.0
    %61 = vmatpush.msra.mxu0 0.0
    %62 = vmatpush.msra.mxu0 0.0
    %63 = vmatpush.msra.mxu0 0.0
    %64 = vmatpush.msra.mxu0 0.0
    %65 = vmatpush.msra.mxu0 0.0
    %66 = vmatpush.msra.mxu0 0.0
    %67 = vmatpush.msra.mxu0 0.0
    %68 = vmatpush.msra.mxu0 0.0
    %69 = vmatpush.msra.mxu0 0.0
    %70 = vmatpush.msra.mxu0 %v49
    %71 = vmatpush.msra.mxu0 %v48
    %72 = vmatpush.msra.mxu0 %v47
    %73 = vmatpush.msra.mxu0 %v46
    %74 = vmatmul.f32.gmra.mxu0 %v56
    %v75 = vpop.f32.mrf.mxu0
    %v76 = vadd.f32 %v52, %v75
    %77 = vdwg.mxu0
    %v78 = vmin.f32 %v76, 20.0
    %v79 = vmul.f32 %v78, 1.442695
    %v80 = vpow.pop %v79
    %v81 = vadd.f32 %v80, 1.0
    %v82 = vlog2.pop %v81
    %v83 = vmul.f32 %v82, 0.6931472
    %v84 = vmul.f32 -0.5, %v80
    %v85 = vadd.f32 %v84, 1.0
    %v86 = vmul.f32 %v85, %v80
    %v87 = vand.u32 2147483647, %v80
    %vm88 = vcmp.lt.f32.partialorder %v87, 0.0004427343
    %v89 = vsel %vm88, %v86, %v83
    %vm90 = vcmask 130048
    %91 = vst.msk [vmem:[#allocation7] sm:$0xff] %vm90, %v89
    // Predicated region
    $region22: #{forward.1} parent=1 // pred_check
      _
    $region23: #{forward.1} parent=1 // pred_check_branch
      %93 = sbr.rel (0) target = $region25
    $region24: #{forward.1} parent=1 // pred_region
      %95 = vsyncadd [#allocation4], 0
      %s97 = sshll.u32 [#allocation7], 4
      %s98 = int_to_ptr.vmem [resolvable:$true] %s97
      %s99 = sshll.u32 %s3, 4
      %s100 = int_to_ptr.hbm [resolvable:$true] %s99
      %102 = dma.vmem_to_hbm [thread:$0]  %s98, 128, %s100, [#allocation4]
    $region25: #{forward.1} parent=1 // pred_fallthru
      _
    // Predicated region
    $region26: #{forward.1} parent=1 // pred_check
      _
    $region27: #{forward.1} parent=1 // pred_check_branch
      %104 = sbr.rel (0) target = $region29
    $region28: #{forward.1} parent=1 // pred_region
      %106 = dma.done [#allocation4], 128
    $region29: #{forward.1} parent=1 // pred_fallthru
      _
    %107 = vsyncpa [#allocation3], 1
    %108 = vsyncpa [#allocation6], 1
    %109 = vsyncpa [#allocation4], 1

</llo_original>
